<compile_context>
chip_gen: v6e
topology: v6e:2x2x1
jax: 0.10.0
libtpu: 0.0.40
codegen_flags: <defaults>
</compile_context>

<pallas_src>
import jax
import jax.numpy as jnp
from jax.experimental import pallas as pl
from jax.experimental.pallas import tpu as pltpu


def _smoothness_kernel(x_ref, acc_ref):
    # x_ref:   (B, H, W)       block of B images for this grid step
    # acc_ref: (1, H-2, W-2)   per-outer-block partial sums; resident across
    #                          the inner ("arbitrary") grid axis.
    @pl.when(pl.program_id(1) == 0)
    def _():
        acc_ref[...] = jnp.zeros_like(acc_ref)

    x = x_ref[...].astype(jnp.float32)                       # (B, H, W)
    center = x[:, 1:-1, 1:-1]
    horizontal = 2.0 * center - x[:, 1:-1, :-2] - x[:, 1:-1, 2:]
    vertical = 2.0 * center - x[:, :-2, 1:-1] - x[:, 2:, 1:-1]
    der_2nd = jnp.abs(horizontal) + jnp.abs(vertical)        # (B, H-2, W-2)

    # Reduce only over the leading (non-lane/non-sublane) axis each step;
    # this is plain VPU adds.  Cross-lane reduction is deferred to the
    # wrapper and done exactly once.
    acc_ref[...] += jnp.sum(der_2nd, axis=0, keepdims=True)


def smoothness_loss(depth: jax.Array, *, block_images: int | None = None) -> jax.Array:
    """Pallas implementation of SmoothnessLoss.forward (NCHW input)."""
    assert depth.ndim == 4, f"expected 4-dimensional data, got {depth.ndim}"
    N, C, H, W = depth.shape
    assert H > 2 and W > 2, "spatial dims must be > 2"

    NC = N * C
    x = depth.reshape(NC, H, W)

    # Images per block: target ~2 MiB of f32 per input block (>=512 KiB is
    # enough to sit near the HBM roofline per measured tiled-op data).
    if block_images is None:
        target_block_bytes = 2 * 1024 * 1024
        block_images = target_block_bytes // (H * W * 4)
    B = max(1, min(NC, int(block_images)))

    n_blocks = -(-NC // B)                      # ceil(NC / B)
    n_outer = 2 if n_blocks >= 2 else 1         # megacore split on v7x
    n_inner = -(-n_blocks // n_outer)
    NC_pad = n_outer * n_inner * B
    if NC_pad != NC:
        # Zero images contribute exactly 0 to the |2nd derivative| sum.
        x = jnp.pad(x, ((0, NC_pad - NC), (0, 0), (0, 0)))

    out_hw = (H - 2, W - 2)

    partials = pl.pallas_call(
        _smoothness_kernel,
        out_shape=jax.ShapeDtypeStruct((n_outer,) + out_hw, jnp.float32),
        grid_spec=pltpu.PrefetchScalarGridSpec(
            num_scalar_prefetch=0,
            grid=(n_outer, n_inner),
            in_specs=[
                pl.BlockSpec((B, H, W), lambda p, q: (p * n_inner + q, 0, 0)),
            ],
            out_specs=pl.BlockSpec((1,) + out_hw, lambda p, q: (p, 0, 0)),
        ),
        compiler_params=pltpu.CompilerParams(
            dimension_semantics=("parallel", "arbitrary"),
            vmem_limit_bytes=32 * 1024 * 1024,
        ),
        cost_estimate=pl.CostEstimate(
            flops=7 * NC * (H - 2) * (W - 2),
            transcendentals=0,
            bytes_accessed=NC_pad * H * W * depth.dtype.itemsize
            + n_outer * (H - 2) * (W - 2) * 4,
        ),
    )(x)

    count = NC * (H - 2) * (W - 2)
    return (jnp.sum(partials) / jnp.float32(count)).astype(depth.dtype)


def smoothness_loss_ref(depth: jax.Array) -> jax.Array:
    """Pure-JAX reference, mirrors the PyTorch module exactly."""
    x = depth
    horizontal = 2 * x[:, :, 1:-1, 1:-1] - x[:, :, 1:-1, :-2] - x[:, :, 1:-1, 2:]
    vertical = 2 * x[:, :, 1:-1, 1:-1] - x[:, :, :-2, 1:-1] - x[:, :, 2:, 1:-1]
    return (jnp.abs(horizontal) + jnp.abs(vertical)).mean()


if __name__ == "__main__":
    key = jax.random.PRNGKey(0)
    depth = jax.random.uniform(key, (2, 4, 16, 16), dtype=jnp.float32)
    ref = smoothness_loss_ref(depth)

    # Default block sizing (all 8 images in one block).
    out = jax.block_until_ready(smoothness_loss(depth))
    assert jnp.allclose(out, ref, rtol=1e-5, atol=1e-6), (out, ref)

    # Force a multi-block (2 x 2) grid with zero-padding to exercise the
    # parallel/arbitrary accumulation path.
    out2 = jax.block_until_ready(smoothness_loss(depth, block_images=3))
    assert jnp.allclose(out2, ref, rtol=1e-5, atol=1e-6), (out2, ref)

    print("KERNEL_OK")
</pallas_src>

<mosaic_0001>
module attributes {stable_mosaic.version = 11 : i64} {
  func.func @_smoothness_kernel(%arg0: i32, %arg1: i32, %arg2: memref<8x16x16xf32, #tpu.memory_space<vmem>>, %arg3: memref<1x14x14xf32, #tpu.memory_space<vmem>>) attributes {dimension_semantics = [#tpu.dimension_semantics<parallel>, #tpu.dimension_semantics<arbitrary>], iteration_bounds = array<i64: 1, 1>, scalar_prefetch = 0 : i64, scratch_operands = 0 : i64, tpu.core_type = #tpu.core_type<tc>, window_params = [{transform_indices = @transform_0, window_bounds = array<i64: 8, 16, 16>}, {transform_indices = @transform_1, window_bounds = array<i64: 1, 14, 14>}]} {
    %c0_i32 = arith.constant 0 : i32
    %0 = arith.cmpi eq, %arg1, %c0_i32 : i32
    %1 = arith.extui %0 : i1 to i32
    %c0_i32_0 = arith.constant 0 : i32
    %2 = arith.cmpi ne, %1, %c0_i32_0 : i32
    scf.if %2 {
      %cst_11 = arith.constant 0.000000e+00 : f32
      %25 = vector.broadcast %cst_11 : f32 to vector<1x14x14xf32>
      %c0_12 = arith.constant 0 : index
      %c0_13 = arith.constant 0 : index
      %c0_14 = arith.constant 0 : index
      %26 = vector.load %arg3[%c0_12, %c0_13, %c0_14] : memref<1x14x14xf32, #tpu.memory_space<vmem>>, vector<1x14x14xf32>
      tpu.vector_store %arg3[%c0_12, %c0_13, %c0_14], %25 {strides = array<i32>} : memref<1x14x14xf32, #tpu.memory_space<vmem>>, vector<1x14x14xf32>,
    } else {
    }
    %c0 = arith.constant 0 : index
    %c0_1 = arith.constant 0 : index
    %c0_2 = arith.constant 0 : index
    %3 = vector.load %arg2[%c0, %c0_1, %c0_2] : memref<8x16x16xf32, #tpu.memory_space<vmem>>, vector<8x16x16xf32>
    %4 = vector.extract_strided_slice %3 {offsets = [0, 1, 1], sizes = [8, 14, 14], strides = [1, 1, 1]} : vector<8x16x16xf32> to vector<8x14x14xf32>
    %cst = arith.constant 2.000000e+00 : f32
    %5 = vector.broadcast %cst : f32 to vector<8x14x14xf32>
    %6 = arith.mulf %5, %4 : vector<8x14x14xf32>
    %7 = vector.extract_strided_slice %3 {offsets = [0, 1, 0], sizes = [8, 14, 14], strides = [1, 1, 1]} : vector<8x16x16xf32> to vector<8x14x14xf32>
    %8 = arith.subf %6, %7 : vector<8x14x14xf32>
    %9 = vector.extract_strided_slice %3 {offsets = [0, 1, 2], sizes = [8, 14, 14], strides = [1, 1, 1]} : vector<8x16x16xf32> to vector<8x14x14xf32>
    %10 = arith.subf %8, %9 : vector<8x14x14xf32>
    %cst_3 = arith.constant 2.000000e+00 : f32
    %11 = vector.broadcast %cst_3 : f32 to vector<8x14x14xf32>
    %12 = arith.mulf %11, %4 : vector<8x14x14xf32>
    %13 = vector.extract_strided_slice %3 {offsets = [0, 0, 1], sizes = [8, 14, 14], strides = [1, 1, 1]} : vector<8x16x16xf32> to vector<8x14x14xf32>
    %14 = arith.subf %12, %13 : vector<8x14x14xf32>
    %15 = vector.extract_strided_slice %3 {offsets = [0, 2, 1], sizes = [8, 14, 14], strides = [1, 1, 1]} : vector<8x16x16xf32> to vector<8x14x14xf32>
    %16 = arith.subf %14, %15 : vector<8x14x14xf32>
    %17 = math.absf %10 : vector<8x14x14xf32>
    %18 = math.absf %16 : vector<8x14x14xf32>
    %19 = arith.addf %17, %18 : vector<8x14x14xf32>
    %c0_4 = arith.constant 0 : index
    %c0_5 = arith.constant 0 : index
    %c0_6 = arith.constant 0 : index
    %20 = vector.load %arg3[%c0_4, %c0_5, %c0_6] : memref<1x14x14xf32, #tpu.memory_space<vmem>>, vector<1x14x14xf32>
    %cst_7 = arith.constant dense<0.000000e+00> : vector<14x14xf32>
    %21 = vector.multi_reduction <add>, %19, %cst_7 [0] : vector<8x14x14xf32> to vector<14x14xf32>
    %22 = vector.shape_cast %21 : vector<14x14xf32> to vector<1x14x14xf32>
    %23 = arith.addf %20, %22 : vector<1x14x14xf32>
    %c0_8 = arith.constant 0 : index
    %c0_9 = arith.constant 0 : index
    %c0_10 = arith.constant 0 : index
    %24 = vector.load %arg3[%c0_8, %c0_9, %c0_10] : memref<1x14x14xf32, #tpu.memory_space<vmem>>, vector<1x14x14xf32>
    tpu.vector_store %arg3[%c0_8, %c0_9, %c0_10], %23 {strides = array<i32>} : memref<1x14x14xf32, #tpu.memory_space<vmem>>, vector<1x14x14xf32>,
    return
  }
  func.func @transform_0(%arg0: i32, %arg1: i32) -> (i32, i32, i32) {
    %c1_i32 = arith.constant 1 : i32
    %0 = arith.muli %arg0, %c1_i32 : i32
    %1 = arith.addi %0, %arg1 : i32
    %c0_i32 = arith.constant 0 : i32
    %c0_i32_0 = arith.constant 0 : i32
    %c0_i32_1 = arith.constant 0 : i32
    return %1, %c0_i32, %c0_i32_0 : i32, i32, i32
  }
  func.func @transform_1(%arg0: i32, %arg1: i32) -> (i32, i32, i32) {
    %c0_i32 = arith.constant 0 : i32
    %c0_i32_0 = arith.constant 0 : i32
    %c0_i32_1 = arith.constant 0 : i32
    return %arg0, %c0_i32, %c0_i32_0 : i32, i32, i32
  }
}

</mosaic_0001>

<llo_original>
// kernel: tpu_custom_call.1
$region0: #{tpu_custom_call.1}
  #allocation0 [shape = 'u32[]', space=smem, size = 0x4, offset = 0x4, fixed_abs, tag = 'smem constant byte address 0x4 - core index']
  #allocation1 [shape = 'u32[144,128]{1,0:T(1,128)}', space=vmem, size = 0x12000, scoped, tag = 'internal scratch']
  %s0 = inlined_call_operand.hbm [shape: f32[8,16,16], index: 0, kind: input, shape index: {}]
  %s1 = inlined_call_operand.vmem [shape: f32[1,14,14], index: 1, kind: output, shape index: {}]
  %s2 = sld [smem:[#allocation0]]
  $region22: #{tpu_custom_call.1} parent=0
    _
  %s4 = ssub.s32 1, %s2
  %s5 = scalar_select 0, %s4, %s2
  $region1: #{tpu_custom_call.1} parent=0
    #allocation2 [shape = 'u8[65536]{0}', space=vmem, size = 0x10000, scoped, tag = 'input window, operand 0, single buffered']
    #allocation3 [shape = 's32[1]{0}', space=sflag, size = 0x4, scoped, tag = 'scoped memory for tpu_custom_call.1']
    %6 = vsyncpa [#allocation3], 0
    // Predicated region
    $region2: #{tpu_custom_call.1} parent=1 // pred_check
      _
    $region3: #{tpu_custom_call.1} parent=1 // pred_check_branch
      %8 = sbr.rel (0) target = $region5
    $region4: #{tpu_custom_call.1} parent=1 // pred_region
      %s9 = sadd.s32 0, 0
      %s10 = smul.u32 8, %s9
      %s12 = ssub.s32 2048, 2048
      %13 = vsyncadd [#allocation3], %s12
      %s14 = smul.addr %s10, 2
      %s15 = smul.addr %s14, 128
      %s16 = scalar_lea.hbm %s0, %s15
      %s17 = sshll.u32 [#allocation2], 4
      %s18 = int_to_ptr.vmem [resolvable:$true] %s17
      %23 = dma.hbm_to_vmem [thread:$0]  %s16, 2048, %s18, [#allocation3], 128, 128, 8
    $region5: #{tpu_custom_call.1} parent=1 // pred_fallthru
      _
    // Predicated region
    $region6: #{tpu_custom_call.1} parent=1 // pred_check
      _
    $region7: #{tpu_custom_call.1} parent=1 // pred_check_branch
      %25 = sbr.rel (0) target = $region9
    $region8: #{tpu_custom_call.1} parent=1 // pred_region
      %26 = dma.done [#allocation3], 2048
    $region9: #{tpu_custom_call.1} parent=1 // pred_fallthru
      _
    %s27 = sadd.s32 0, 0
    %s28 = smul.u32 8, %s27
    %p29 = scmp.eq.s32.totalorder 0, 0
    // Predicated region
    $region10: #{tpu_custom_call.1} parent=1 // pred_check
      %p30 = pneg %p29
    $region11: #{tpu_custom_call.1} parent=1 // pred_check_branch
      %32 = sbr.rel (%p30) target = $region13
    $region12: #{tpu_custom_call.1} parent=1 // pred_region
      %vm33 = vcmask 113664
      %34 = vst.msk [vmem:[%s1] sm:$0xff] %vm33, 0.0
      %vm35 = vcmask 111616
      %36 = vst.msk [vmem:[%s1 + $0x8] sm:$0x3f] %vm35, 0.0
    $region13: #{tpu_custom_call.1} parent=1 // pred_fallthru
      _
    %v37 = vld [vmem:[#allocation2] sm:$0xff]
    %v38 = vld [vmem:[#allocation2 + $0x8] sm:$0xff]
    %v39 = vld [vmem:[#allocation2 + $0x10] sm:$0xff]
    %v40 = vld [vmem:[#allocation2 + $0x18] sm:$0xff]
    %v41 = vld [vmem:[#allocation2 + $0x20] sm:$0xff]
    %v42 = vld [vmem:[#allocation2 + $0x28] sm:$0xff]
    %v43 = vld [vmem:[#allocation2 + $0x30] sm:$0xff]
    %v44 = vld [vmem:[#allocation2 + $0x38] sm:$0xff]
    %v45 = vld [vmem:[#allocation2 + $0x40] sm:$0xff]
    %v46 = vld [vmem:[#allocation2 + $0x48] sm:$0xff]
    %v47 = vld [vmem:[#allocation2 + $0x50] sm:$0xff]
    %v48 = vld [vmem:[#allocation2 + $0x58] sm:$0xff]
    %v49 = vld [vmem:[#allocation2 + $0x60] sm:$0xff]
    %v50 = vld [vmem:[#allocation2 + $0x68] sm:$0xff]
    %v51 = vld [vmem:[#allocation2 + $0x70] sm:$0xff]
    %v52 = vld [vmem:[#allocation2 + $0x78] sm:$0xff]
    %v53 = vmul.f32 %v37, 2.0
    %v54 = vmul.f32 %v38, 2.0
    %v55 = vmul.f32 %v39, 2.0
    %v56 = vmul.f32 %v40, 2.0
    %v57 = vmul.f32 %v41, 2.0
    %v58 = vmul.f32 %v42, 2.0
    %v59 = vmul.f32 %v43, 2.0
    %v60 = vmul.f32 %v44, 2.0
    %v61 = vmul.f32 %v45, 2.0
    %v62 = vmul.f32 %v46, 2.0
    %v63 = vmul.f32 %v47, 2.0
    %v64 = vmul.f32 %v48, 2.0
    %v65 = vmul.f32 %v49, 2.0
    %v66 = vmul.f32 %v50, 2.0
    %v67 = vmul.f32 %v51, 2.0
    %v68 = vmul.f32 %v52, 2.0
    %85 = vrot.lane.b32.xlu0 %v37, 1
    %v86 = vpop.permute.xlu0 %85
    %87 = vrot.lane.b32.xlu0 %v38, 1
    %v88 = vpop.permute.xlu0 %87
    %89 = vrot.lane.b32.xlu0 %v39, 1
    %v90 = vpop.permute.xlu0 %89
    %91 = vrot.lane.b32.xlu0 %v40, 1
    %v92 = vpop.permute.xlu0 %91
    %93 = vrot.lane.b32.xlu0 %v41, 1
    %v94 = vpop.permute.xlu0 %93
    %95 = vrot.lane.b32.xlu0 %v42, 1
    %v96 = vpop.permute.xlu0 %95
    %97 = vrot.lane.b32.xlu0 %v43, 1
    %v98 = vpop.permute.xlu0 %97
    %99 = vrot.lane.b32.xlu0 %v44, 1
    %v100 = vpop.permute.xlu0 %99
    %101 = vrot.lane.b32.xlu0 %v45, 1
    %v102 = vpop.permute.xlu0 %101
    %103 = vrot.lane.b32.xlu0 %v46, 1
    %v104 = vpop.permute.xlu0 %103
    %105 = vrot.lane.b32.xlu0 %v47, 1
    %v106 = vpop.permute.xlu0 %105
    %107 = vrot.lane.b32.xlu0 %v48, 1
    %v108 = vpop.permute.xlu0 %107
    %109 = vrot.lane.b32.xlu0 %v49, 1
    %v110 = vpop.permute.xlu0 %109
    %111 = vrot.lane.b32.xlu0 %v50, 1
    %v112 = vpop.permute.xlu0 %111
    %113 = vrot.lane.b32.xlu0 %v51, 1
    %v114 = vpop.permute.xlu0 %113
    %115 = vrot.lane.b32.xlu0 %v52, 1
    %v116 = vpop.permute.xlu0 %115
    %v133 = vsub.f32 %v53, %v86
    %v134 = vsub.f32 %v54, %v88
    %v135 = vsub.f32 %v55, %v90
    %v136 = vsub.f32 %v56, %v92
    %v137 = vsub.f32 %v57, %v94
    %v138 = vsub.f32 %v58, %v96
    %v139 = vsub.f32 %v59, %v98
    %v140 = vsub.f32 %v60, %v100
    %v141 = vsub.f32 %v61, %v102
    %v142 = vsub.f32 %v62, %v104
    %v143 = vsub.f32 %v63, %v106
    %v144 = vsub.f32 %v64, %v108
    %v145 = vsub.f32 %v65, %v110
    %v146 = vsub.f32 %v66, %v112
    %v147 = vsub.f32 %v67, %v114
    %v148 = vsub.f32 %v68, %v116
    %149 = vrot.lane.b32.xlu0 %v37, 127
    %v150 = vpop.permute.xlu0 %149
    %151 = vrot.lane.b32.xlu0 %v38, 127
    %v152 = vpop.permute.xlu0 %151
    %153 = vrot.lane.b32.xlu0 %v39, 127
    %v154 = vpop.permute.xlu0 %153
    %155 = vrot.lane.b32.xlu0 %v40, 127
    %v156 = vpop.permute.xlu0 %155
    %157 = vrot.lane.b32.xlu0 %v41, 127
    %v158 = vpop.permute.xlu0 %157
    %159 = vrot.lane.b32.xlu0 %v42, 127
    %v160 = vpop.permute.xlu0 %159
    %161 = vrot.lane.b32.xlu0 %v43, 127
    %v162 = vpop.permute.xlu0 %161
    %163 = vrot.lane.b32.xlu0 %v44, 127
    %v164 = vpop.permute.xlu0 %163
    %165 = vrot.lane.b32.xlu0 %v45, 127
    %v166 = vpop.permute.xlu0 %165
    %167 = vrot.lane.b32.xlu0 %v46, 127
    %v168 = vpop.permute.xlu0 %167
    %169 = vrot.lane.b32.xlu0 %v47, 127
    %v170 = vpop.permute.xlu0 %169
    %171 = vrot.lane.b32.xlu0 %v48, 127
    %v172 = vpop.permute.xlu0 %171
    %173 = vrot.lane.b32.xlu0 %v49, 127
    %v174 = vpop.permute.xlu0 %173
    %175 = vrot.lane.b32.xlu0 %v50, 127
    %v176 = vpop.permute.xlu0 %175
    %177 = vrot.lane.b32.xlu0 %v51, 127
    %v178 = vpop.permute.xlu0 %177
    %179 = vrot.lane.b32.xlu0 %v52, 127
    %v180 = vpop.permute.xlu0 %179
    %v197 = vsub.f32 %v133, %v150
    %v198 = vsub.f32 %v134, %v152
    %v199 = vsub.f32 %v135, %v154
    %v200 = vsub.f32 %v136, %v156
    %v201 = vsub.f32 %v137, %v158
    %v202 = vsub.f32 %v138, %v160
    %v203 = vsub.f32 %v139, %v162
    %v204 = vsub.f32 %v140, %v164
    %v205 = vsub.f32 %v141, %v166
    %v206 = vsub.f32 %v142, %v168
    %v207 = vsub.f32 %v143, %v170
    %v208 = vsub.f32 %v144, %v172
    %v209 = vsub.f32 %v145, %v174
    %v210 = vsub.f32 %v146, %v176
    %v211 = vsub.f32 %v147, %v178
    %v212 = vsub.f32 %v148, %v180
    %vm213 = vcmask 1040384
    %v214 = vrot.slane %v37, 7
    %v215 = vrot.slane %v38, 7
    %v216 = vsel %vm213, %v214, %v215
    %v217 = vrot.slane %v39, 7
    %v218 = vrot.slane %v40, 7
    %v219 = vsel %vm213, %v217, %v218
    %v220 = vrot.slane %v41, 7
    %v221 = vrot.slane %v42, 7
    %v222 = vsel %vm213, %v220, %v221
    %v223 = vrot.slane %v43, 7
    %v224 = vrot.slane %v44, 7
    %v225 = vsel %vm213, %v223, %v224
    %v226 = vrot.slane %v45, 7
    %v227 = vrot.slane %v46, 7
    %v228 = vsel %vm213, %v226, %v227
    %v229 = vrot.slane %v47, 7
    %v230 = vrot.slane %v48, 7
    %v231 = vsel %vm213, %v229, %v230
    %v232 = vrot.slane %v49, 7
    %v233 = vrot.slane %v50, 7
    %v234 = vsel %vm213, %v232, %v233
    %v235 = vrot.slane %v51, 7
    %v236 = vrot.slane %v52, 7
    %v237 = vsel %vm213, %v235, %v236
    %v254 = vsub.f32 %v53, %v214
    %v255 = vsub.f32 %v54, %v216
    %v256 = vsub.f32 %v55, %v217
    %v257 = vsub.f32 %v56, %v219
    %v258 = vsub.f32 %v57, %v220
    %v259 = vsub.f32 %v58, %v222
    %v260 = vsub.f32 %v59, %v223
    %v261 = vsub.f32 %v60, %v225
    %v262 = vsub.f32 %v61, %v226
    %v263 = vsub.f32 %v62, %v228
    %v264 = vsub.f32 %v63, %v229
    %v265 = vsub.f32 %v64, %v231
    %v266 = vsub.f32 %v65, %v232
    %v267 = vsub.f32 %v66, %v234
    %v268 = vsub.f32 %v67, %v235
    %v269 = vsub.f32 %v68, %v237
    %vm270 = vcmask 1046528
    %v271 = vrot.slane %v37, 1
    %v272 = vrot.slane %v38, 1
    %v273 = vsel %vm270, %v271, %v272
    %v274 = vrot.slane %v39, 1
    %v275 = vrot.slane %v40, 1
    %v276 = vsel %vm270, %v274, %v275
    %v277 = vrot.slane %v41, 1
    %v278 = vrot.slane %v42, 1
    %v279 = vsel %vm270, %v277, %v278
    %v280 = vrot.slane %v43, 1
    %v281 = vrot.slane %v44, 1
    %v282 = vsel %vm270, %v280, %v281
    %v283 = vrot.slane %v45, 1
    %v284 = vrot.slane %v46, 1
    %v285 = vsel %vm270, %v283, %v284
    %v286 = vrot.slane %v47, 1
    %v287 = vrot.slane %v48, 1
    %v288 = vsel %vm270, %v286, %v287
    %v289 = vrot.slane %v49, 1
    %v290 = vrot.slane %v50, 1
    %v291 = vsel %vm270, %v289, %v290
    %v292 = vrot.slane %v51, 1
    %v293 = vrot.slane %v52, 1
    %v294 = vsel %vm270, %v292, %v293
    %v311 = vsub.f32 %v254, %v273
    %v312 = vsub.f32 %v255, %v272
    %v313 = vsub.f32 %v256, %v276
    %v314 = vsub.f32 %v257, %v275
    %v315 = vsub.f32 %v258, %v279
    %v316 = vsub.f32 %v259, %v278
    %v317 = vsub.f32 %v260, %v282
    %v318 = vsub.f32 %v261, %v281
    %v319 = vsub.f32 %v262, %v285
    %v320 = vsub.f32 %v263, %v284
    %v321 = vsub.f32 %v264, %v288
    %v322 = vsub.f32 %v265, %v287
    %v323 = vsub.f32 %v266, %v291
    %v324 = vsub.f32 %v267, %v290
    %v325 = vsub.f32 %v268, %v294
    %v326 = vsub.f32 %v269, %v293
    %v327 = vand.u32 2147483647, %v197
    %v328 = vand.u32 2147483647, %v198
    %v329 = vand.u32 2147483647, %v199
    %v330 = vand.u32 2147483647, %v200
    %v331 = vand.u32 2147483647, %v201
    %v332 = vand.u32 2147483647, %v202
    %v333 = vand.u32 2147483647, %v203
    %v334 = vand.u32 2147483647, %v204
    %v335 = vand.u32 2147483647, %v205
    %v336 = vand.u32 2147483647, %v206
    %v337 = vand.u32 2147483647, %v207
    %v338 = vand.u32 2147483647, %v208
    %v339 = vand.u32 2147483647, %v209
    %v340 = vand.u32 2147483647, %v210
    %v341 = vand.u32 2147483647, %v211
    %v342 = vand.u32 2147483647, %v212
    %v343 = vand.u32 2147483647, %v311
    %v344 = vand.u32 2147483647, %v312
    %v345 = vand.u32 2147483647, %v313
    %v346 = vand.u32 2147483647, %v314
    %v347 = vand.u32 2147483647, %v315
    %v348 = vand.u32 2147483647, %v316
    %v349 = vand.u32 2147483647, %v317
    %v350 = vand.u32 2147483647, %v318
    %v351 = vand.u32 2147483647, %v319
    %v352 = vand.u32 2147483647, %v320
    %v353 = vand.u32 2147483647, %v321
    %v354 = vand.u32 2147483647, %v322
    %v355 = vand.u32 2147483647, %v323
    %v356 = vand.u32 2147483647, %v324
    %v357 = vand.u32 2147483647, %v325
    %v358 = vand.u32 2147483647, %v326
    %v359 = vadd.f32 %v327, %v343
    %v360 = vadd.f32 %v328, %v344
    %v361 = vadd.f32 %v329, %v345
    %v362 = vadd.f32 %v330, %v346
    %v363 = vadd.f32 %v331, %v347
    %v364 = vadd.f32 %v332, %v348
    %v365 = vadd.f32 %v333, %v349
    %v366 = vadd.f32 %v334, %v350
    %v367 = vadd.f32 %v335, %v351
    %v368 = vadd.f32 %v336, %v352
    %v369 = vadd.f32 %v337, %v353
    %v370 = vadd.f32 %v338, %v354
    %v371 = vadd.f32 %v339, %v355
    %v372 = vadd.f32 %v340, %v356
    %v373 = vadd.f32 %v341, %v357
    %v374 = vadd.f32 %v342, %v358
    %v375 = vld [vmem:[%s1] sm:$0xff]
    %v376 = vld [vmem:[%s1 + $0x8] sm:$0x3f]
    %vm377 = vcmask 121865
    %v378 = vsel %vm377, %v359, 0.0
    %v379 = vsel %vm377, %v361, 0.0
    %v380 = vadd.f32 %v378, %v379
    %v381 = vsel %vm377, %v363, 0.0
    %v382 = vadd.f32 %v380, %v381
    %v383 = vsel %vm377, %v365, 0.0
    %v384 = vadd.f32 %v382, %v383
    %v385 = vsel %vm377, %v367, 0.0
    %v386 = vadd.f32 %v384, %v385
    %v387 = vsel %vm377, %v369, 0.0
    %v388 = vadd.f32 %v386, %v387
    %v389 = vsel %vm377, %v371, 0.0
    %v390 = vadd.f32 %v388, %v389
    %v391 = vsel %vm377, %v373, 0.0
    %v392 = vadd.f32 %v390, %v391
    %vm393 = vcmask 120840
    %v394 = vsel %vm393, %v360, 0.0
    %v395 = vsel %vm393, %v362, 0.0
    %v396 = vadd.f32 %v394, %v395
    %v397 = vsel %vm393, %v364, 0.0
    %v398 = vadd.f32 %v396, %v397
    %v399 = vsel %vm393, %v366, 0.0
    %v400 = vadd.f32 %v398, %v399
    %v401 = vsel %vm393, %v368, 0.0
    %v402 = vadd.f32 %v400, %v401
    %v403 = vsel %vm393, %v370, 0.0
    %v404 = vadd.f32 %v402, %v403
    %v405 = vsel %vm393, %v372, 0.0
    %v406 = vadd.f32 %v404, %v405
    %v407 = vsel %vm393, %v374, 0.0
    %v408 = vadd.f32 %v406, %v407
    %v411 = vrot.slane %v392, 1
    %v412 = vrot.slane %v408, 1
    %v413 = vsel %vm270, %v411, %v412
    %414 = vrot.lane.b32.xlu0 %v413, 127
    %v415 = vpop.permute.xlu0 %414
    %416 = vrot.lane.b32.xlu0 %v412, 127
    %v417 = vpop.permute.xlu0 %416
    %v420 = vadd.f32 %v375, %v415
    %v421 = vadd.f32 %v376, %v417
    %vm422 = vcmask 113664
    %423 = vst.msk [vmem:[%s1] sm:$0xff] %vm422, %v420
    %vm424 = vcmask 111616
    %425 = vst.msk [vmem:[%s1 + $0x8] sm:$0x3f] %vm424, %v421
    // Predicated region
    $region14: #{tpu_custom_call.1} parent=1 // pred_check
      _
    $region15: #{tpu_custom_call.1} parent=1 // pred_check_branch
      %427 = sbr.rel (0) target = $region17
    $region16: #{tpu_custom_call.1} parent=1 // pred_region
      _
    $region17: #{tpu_custom_call.1} parent=1 // pred_fallthru
      _
    // Predicated region
    $region18: #{tpu_custom_call.1} parent=1 // pred_check
      _
    $region19: #{tpu_custom_call.1} parent=1 // pred_check_branch
      %429 = sbr.rel (0) target = $region21
    $region20: #{tpu_custom_call.1} parent=1 // pred_region
      _
    $region21: #{tpu_custom_call.1} parent=1 // pred_fallthru
      _
    %430 = vsyncpa [#allocation3], 1

</llo_original>
